<compile_context>
chip_gen: v7x
topology: tpu7x:2x2x1
jax: 0.10.0
libtpu: 0.0.40
codegen_flags: <defaults>
</compile_context>

<pallas_src>
import math
import jax
import jax.numpy as jnp
from jax.experimental import pallas as pl
from jax.experimental.pallas import tpu as pltpu

# ----------------------------------------------------------------------------
# Shapes consistent with the module's forward (L must be 1 for the
# `view(B, -1)` -> Linear(2D+T, ...) to type-check, exactly as in PyTorch).
B = 8             # batch
S = 8             # seq length (args.max_len)
D = 32            # hidden_size
T = 16            # time_emb_dim
ITEM_NUM = 4      # args.num_items
V = ITEM_NUM + 1  # item_num + 1 (vocab for logits / x)
L = 1             # x is (B, 1, V)

VP = 128          # vocab axis padded to a full 128-lane tile (lane-dense output)

# ---- activation slab (lane width D=32): [ h_flat | gh | t_emb(pad) | x(pad) ]
R_H = 0
R_GH = B * S                 # 64
R_T = B * S + B              # 72
R_X = B * S + 2 * B          # 80
HX_ROWS = B * S + 3 * B      # 88   (all offsets multiples of 8 -> aligned views)

# ---- slab_d (lane width D=32): [ W1 (V rows, padded to D) | Wd2 | b1 | bd2 ]
R_W1 = 0
R_WD2 = D                    # 32
R_B1 = R_WD2 + 2 * D         # 96
R_BD2 = R_B1 + 8             # 104
SLAB_D_ROWS = R_BD2 + 8      # 112

# ---- slab_m (lane width 2D=64): [ Wd1_x | Wd1_h | Wd1_t (T rows, padded to D) | bd1 ]
R_WD1X = 0
R_WD1H = D                   # 32
R_WD1T = 2 * D               # 64
R_BD1 = 3 * D                # 96
SLAB_M_ROWS = R_BD1 + 8      # 104

# ---- slab_v (lane width VP=128): [ Wo | Wsas | bo ]
R_WO = 0
R_WSAS = D                   # 32
R_BO = 2 * D                 # 64
SLAB_V_ROWS = R_BO + 8       # 72


# ----------------------------------------------------------------------------
# Fused kernel: sign-normalize + w1 + diffuser mlp2 + diff_out + SASRec head.
def tenc_fused_kernel(hx_ref, wd_ref, wm_ref, wv_ref, out_ref):
    """All operands are full-array VMEM blocks (grid-free call).

    hx_ref : (88, 32)   [ h_flat (B*S) | gh (B) | t_emb pad (B) | x pad (B) ]
    wd_ref : (112, 32)  [ W1 | Wd2 | b1 | bd2 ]
    wm_ref : (104, 64)  [ Wd1_x | Wd1_h | Wd1_t | bd1 ]
    wv_ref : (72, 128)  [ Wo | Wsas | bo ]
    out_ref: (B + B*S, 128)  rows [0:B] diff_logits, rows [B:] logits
                             (lanes >= V are zero)
    """
    f32 = jnp.float32
    # NOTE: f32 operands kept for all dots at these toy shapes (exact check).
    # For v6e/v7x at production sizes: cast dot operands to bf16 and keep
    # preferred_element_type=f32; on v7x never int8 (MXU is bf16/fp8 only).

    # Static, sublane-aligned row views into the activation slab (zero cost).
    h = hx_ref[R_H:R_H + B * S, :]                               # (B*S, D)
    gh = hx_ref[R_GH:R_GH + B, :]                                # (B, D)
    t_pad = hx_ref[R_T:R_T + B, :]                               # (B, D) lanes>=T zero
    x = hx_ref[R_X:R_X + B, :]                                   # (B, D) lanes>=V zero

    # --- SASRec head (largest matmul): logits = h_flat @ Wsas ---------------
    logits = jnp.dot(h, wv_ref[R_WSAS:R_WSAS + D, :],
                     preferred_element_type=f32)                 # (B*S, VP)
    out_ref[B:B + B * S, :] = logits                             # 128-lane vst

    # --- F.normalize(x): PyTorch DEFAULT dim=1 on (B,1,V) normalizes over the
    # size-1 L axis => x / max(|x|, 1e-12), i.e. sign(x) for non-tiny x.
    # Realized as VPU compare/select (no divide).  Faithful to PyTorch; the
    # original model most likely intended dim=-1.  Padded lanes stay 0.
    absx = jnp.abs(x)
    xn = jnp.where(absx >= 1e-12,
                   jnp.where(x >= 0, jnp.float32(1.0), jnp.float32(-1.0)),
                   x * 1e12)

    # --- x = self.w1(x)  (rows >= V of W1 are zero, padded lanes of x are 0) --
    xw = (jnp.dot(xn, wd_ref[R_W1:R_W1 + D, :], preferred_element_type=f32)
          + wd_ref[R_B1:R_B1 + 1, :])                            # (B, D)

    # --- diffuser 'mlp2' layer 0 on cat([xw, gathered_h, t]) -----------------
    # self.drop (p=0.5) is identity in eval mode.
    # TODO(synk): train-mode stochastic dropout not implemented (eval semantics).
    # Split matmuls against aligned row blocks of Wd1 == concat @ Wd1.
    z = (jnp.dot(xw, wm_ref[R_WD1X:R_WD1X + D, :], preferred_element_type=f32)
         + jnp.dot(gh, wm_ref[R_WD1H:R_WD1H + D, :], preferred_element_type=f32)
         + jnp.dot(t_pad, wm_ref[R_WD1T:R_WD1T + D, :], preferred_element_type=f32)
         + wm_ref[R_BD1:R_BD1 + 1, :])
    z = jnp.tanh(z)                                              # (B, 2D)

    # --- diffuser 'mlp2' layer 2 ---------------------------------------------
    res = (jnp.dot(z, wd_ref[R_WD2:R_WD2 + 2 * D, :], preferred_element_type=f32)
           + wd_ref[R_BD2:R_BD2 + 1, :])                         # (B, D)

    # --- diff_logits = self.diff_out(res)  (lane-dense 128-wide store) -------
    out_ref[0:B, :] = (jnp.dot(res, wv_ref[R_WO:R_WO + D, :],
                               preferred_element_type=f32)
                       + wv_ref[R_BO:R_BO + 1, :])               # (B, VP)


# ----------------------------------------------------------------------------
def timestep_embedding(timesteps, dim, max_period=10000):
    """Sinusoidal timestep embeddings, matching Tenc.timestep_embedding
    ([cos, sin] order, same freqs).  Trig stays in XLA (tiny)."""
    half = dim // 2
    freqs = jnp.exp(-math.log(max_period)
                    * jnp.arange(half, dtype=jnp.float32) / half)
    ang = timesteps.astype(jnp.float32)[:, None] * freqs[None, :]
    emb = jnp.concatenate([jnp.cos(ang), jnp.sin(ang)], axis=-1)
    if dim % 2:
        emb = jnp.concatenate([emb, jnp.zeros_like(emb[:, :1])], axis=-1)
    return emb


def init_params(key):
    ks = jax.random.split(key, 10)
    sc = 0.1
    p = {
        # w1 : nn.Linear(item_num+1, hidden_size) -> stored transposed (V, D)
        "w1": sc * jax.random.normal(ks[0], (V, D), jnp.float32),
        "b1": sc * jax.random.normal(ks[1], (1, D), jnp.float32),
        # diffuser[0] : Linear(2D+T, 2D) -> transposed (2D+T, 2D)
        "wd1": sc * jax.random.normal(ks[2], (2 * D + T, 2 * D), jnp.float32),
        "bd1": sc * jax.random.normal(ks[3], (1, 2 * D), jnp.float32),
        # diffuser[2] : Linear(2D, D) -> transposed
        "wd2": sc * jax.random.normal(ks[4], (2 * D, D), jnp.float32),
        "bd2": sc * jax.random.normal(ks[5], (1, D), jnp.float32),
        # diff_out : Linear(D, item_num+1) -> transposed
        "wo": sc * jax.random.normal(ks[6], (D, V), jnp.float32),
        "bo": sc * jax.random.normal(ks[7], (1, V), jnp.float32),
        # SASRec stand-in (external InitModel): item embedding + linear head
        "item_emb": sc * jax.random.normal(ks[8], (V, D), jnp.float32),
        "sas_head": sc * jax.random.normal(ks[9], (D, V), jnp.float32),
    }
    return p


def pack_params(p):
    """Pre-pack all weights & biases into three lane-width-grouped slabs so the
    kernel sees 3 weight DMAs instead of 9+.  Done once, outside jit.
    (If weight DMA ever shows in a profile, these could be lane-packed further
    into a single 128-wide slab to drop 2 more descriptors.)"""
    slab_d = jnp.zeros((SLAB_D_ROWS, D), jnp.float32)
    slab_d = slab_d.at[R_W1:R_W1 + V, :].set(p["w1"])          # rows V..D-1 stay 0
    slab_d = slab_d.at[R_WD2:R_WD2 + 2 * D, :].set(p["wd2"])
    slab_d = slab_d.at[R_B1, :].set(p["b1"][0])
    slab_d = slab_d.at[R_BD2, :].set(p["bd2"][0])

    slab_m = jnp.zeros((SLAB_M_ROWS, 2 * D), jnp.float32)
    slab_m = slab_m.at[R_WD1X:R_WD1X + 2 * D, :].set(p["wd1"][:2 * D])   # x & h blocks
    slab_m = slab_m.at[R_WD1T:R_WD1T + T, :].set(p["wd1"][2 * D:])       # time block, rows T..D-1 stay 0
    slab_m = slab_m.at[R_BD1, :].set(p["bd1"][0])

    slab_v = jnp.zeros((SLAB_V_ROWS, VP), jnp.float32)
    slab_v = slab_v.at[R_WO:R_WO + D, 0:V].set(p["wo"])
    slab_v = slab_v.at[R_WSAS:R_WSAS + D, 0:V].set(p["sas_head"])
    slab_v = slab_v.at[R_BO, 0:V].set(p["bo"][0])

    return {"slab_d": slab_d, "slab_m": slab_m, "slab_v": slab_v,
            "item_emb": p["item_emb"]}


@jax.jit
def tenc_forward(packed, x, seqs, step, random_indice):
    """Mirrors Tenc.forward(..., pretrain=False), diffuser_type='mlp2', eval mode.

    x: (B, 1, V) f32, seqs: (B, S) i32, step: (B,) i32, random_indice: (B,) i32.
    Returns (predicted_x (B,1,V), logits (B*S,V), diff_logits (B,V)).
    """
    # TODO(synk): SASRec.predictAll is an external pretrained module not defined
    # in this file; its embedding lookup is a stand-in gather here (XLA), and its
    # linear head is fused INTO the Pallas kernel below.
    h = packed["item_emb"][seqs]                        # (B, S, D)
    h_flat = h.reshape(B * S, D)

    # gh gather done HERE (fuses with the item_emb gather above in XLA);
    # random_indice stays int32 end-to-end (no float round-trip).
    gh = h[jnp.arange(B), random_indice, :]             # (B, D)

    # Timestep-embedding trig (128 sin/cos evals) stays in XLA; padded to D lanes.
    t_emb = timestep_embedding(step, T)                 # (B, T)
    t_pad = jnp.pad(t_emb, ((0, 0), (0, D - T)))        # (B, D)

    # x padded V=5 -> D=32 lanes (zeros beyond V; W1 rows beyond V are zero too).
    x_pad = jnp.pad(x.reshape(B, V), ((0, 0), (0, D - V)))

    # Single activation slab: one input DMA descriptor instead of three.
    hx = jnp.concatenate([h_flat, gh, t_pad, x_pad], axis=0)    # (88, D)

    # Single grid-free pallas_call: tiny shapes => no grid / no (8,128) block
    # constraints; one output slab holds both diff_logits and the SASRec logits.
    # (At production batch/vocab sizes: grid over B*S rows and vocab-N tiles with
    # dimension_semantics=("parallel", ...) to use both v7x TensorCores, tiles
    # sized per generation: v7x 64 MiB VMEM / 32 MiB scoped vs 128 MiB on v5e/v6e,
    # and set pltpu.CompilerParams(vmem_limit_bytes=...) explicitly.)
    vmem = pl.BlockSpec(memory_space=pltpu.MemorySpace.VMEM)
    out = pl.pallas_call(
        tenc_fused_kernel,
        out_shape=jax.ShapeDtypeStruct((B + B * S, VP), jnp.float32),
        in_specs=[vmem] * 4,
        out_specs=vmem,
    )(hx, packed["slab_d"], packed["slab_m"], packed["slab_v"])

    # These slices exist only to honor the original return shapes; downstream
    # code that can consume the padded (.,128) slab should skip them.
    diff_logits = out[:B, :V]                           # (B, V)
    logits = out[B:, :V]                                # (B*S, V)
    predicted_x = diff_logits[:, None, :]               # (B, 1, V)
    return predicted_x, logits, diff_logits


# ----------------------------------------------------------------------------
# Pure-JAX reference (mirrors the PyTorch forward).  HIGHEST precision so the
# reference is true-f32 and the check can be tight (the Pallas f32 MXU path is
# f32-accurate).
def tenc_reference(params, x, seqs, step, random_indice):
    hp = jax.lax.Precision.HIGHEST
    b = x.shape[0]
    h = params["item_emb"][seqs]                                   # (B,S,D)
    logits = jnp.dot(h.reshape(-1, D), params["sas_head"], precision=hp)
    x2 = x.reshape(b, V)
    xn = x2 / jnp.maximum(jnp.abs(x2), 1e-12)                      # F.normalize, dim=1 on (B,1,V)
    xw = jnp.dot(xn, params["w1"], precision=hp) + params["b1"]
    gh = h[jnp.arange(b), random_indice, :]
    t = timestep_embedding(step, T)
    cat = jnp.concatenate([xw, gh, t], axis=-1)                    # drop(p=.5) = id in eval
    z = jnp.tanh(jnp.dot(cat, params["wd1"], precision=hp) + params["bd1"])
    res = jnp.dot(z, params["wd2"], precision=hp) + params["bd2"]
    dl = jnp.dot(res, params["wo"], precision=hp) + params["bo"]
    return dl[:, None, :], logits, dl


if __name__ == "__main__":
    key = jax.random.PRNGKey(0)
    k_param, k_x, k_seq, k_step, k_idx = jax.random.split(key, 5)

    params = init_params(k_param)
    packed = pack_params(params)

    x = jax.random.normal(k_x, (B, L, V), jnp.float32)
    seqs = jax.random.randint(k_seq, (B, S), 0, V, dtype=jnp.int32)
    step = jax.random.randint(k_step, (B,), 0, 200, dtype=jnp.int32)
    random_indice = jax.random.randint(k_idx, (B,), 0, S, dtype=jnp.int32)

    predicted_x, logits, diff_logits = tenc_forward(packed, x, seqs, step,
                                                    random_indice)
    jax.block_until_ready((predicted_x, logits, diff_logits))

    assert predicted_x.shape == (B, 1, V)
    assert logits.shape == (B * S, V)
    assert diff_logits.shape == (B, V)

    # Numerical check against the pure-JAX f32 reference.
    ref_px, ref_logits, ref_dl = tenc_reference(params, x, seqs, step,
                                                random_indice)
    assert jnp.allclose(diff_logits, ref_dl, atol=1e-4, rtol=1e-4)
    assert jnp.allclose(logits, ref_logits, atol=1e-4, rtol=1e-4)
    assert jnp.allclose(predicted_x, ref_px, atol=1e-4, rtol=1e-4)

    print("KERNEL_OK")
</pallas_src>

<mosaic_0001>
module attributes {stable_mosaic.version = 11 : i64} {
  func.func @tenc_fused_kernel(%arg0: memref<88x32xf32, #tpu.memory_space<vmem>>, %arg1: memref<112x32xf32, #tpu.memory_space<vmem>>, %arg2: memref<104x64xf32, #tpu.memory_space<vmem>>, %arg3: memref<72x128xf32, #tpu.memory_space<vmem>>, %arg4: memref<72x128xf32, #tpu.memory_space<vmem>>) attributes {dimension_semantics = [], scalar_prefetch = 0 : i64, scratch_operands = 0 : i64, tpu.core_type = #tpu.core_type<tc>} {
    %c0 = arith.constant 0 : index
    %c0_0 = arith.constant 0 : index
    %0 = vector.load %arg0[%c0, %c0_0] : memref<88x32xf32, #tpu.memory_space<vmem>>, vector<64x32xf32>
    %c64 = arith.constant 64 : index
    %c0_1 = arith.constant 0 : index
    %1 = vector.load %arg0[%c64, %c0_1] : memref<88x32xf32, #tpu.memory_space<vmem>>, vector<8x32xf32>
    %c72 = arith.constant 72 : index
    %c0_2 = arith.constant 0 : index
    %2 = vector.load %arg0[%c72, %c0_2] : memref<88x32xf32, #tpu.memory_space<vmem>>, vector<8x32xf32>
    %c80 = arith.constant 80 : index
    %c0_3 = arith.constant 0 : index
    %3 = vector.load %arg0[%c80, %c0_3] : memref<88x32xf32, #tpu.memory_space<vmem>>, vector<8x32xf32>
    %c32 = arith.constant 32 : index
    %c0_4 = arith.constant 0 : index
    %4 = vector.load %arg3[%c32, %c0_4] : memref<72x128xf32, #tpu.memory_space<vmem>>, vector<32x128xf32>
    %cst = arith.constant dense<0.000000e+00> : vector<64x128xf32>
    %5 = tpu.matmul %0, %4, %cst {dimension_numbers = #tpu.dot_dimension_numbers<[1], [0], [0], [1], [0, 0, 1, 1], [], []>} : vector<64x32xf32>, vector<32x128xf32>, vector<64x128xf32> -> vector<64x128xf32>
    %c8 = arith.constant 8 : index
    %c0_5 = arith.constant 0 : index
    %6 = vector.load %arg4[%c8, %c0_5] : memref<72x128xf32, #tpu.memory_space<vmem>>, vector<64x128xf32>
    tpu.vector_store %arg4[%c8, %c0_5], %5 {strides = array<i32>} : memref<72x128xf32, #tpu.memory_space<vmem>>, vector<64x128xf32>,
    %7 = math.absf %3 : vector<8x32xf32>
    %cst_6 = arith.constant 9.99999996E-13 : f32
    %8 = vector.broadcast %cst_6 : f32 to vector<8x32xf32>
    %9 = arith.cmpf oge, %7, %8 : vector<8x32xf32>
    %cst_7 = arith.constant 0.000000e+00 : f32
    %10 = vector.broadcast %cst_7 : f32 to vector<8x32xf32>
    %11 = arith.cmpf oge, %3, %10 : vector<8x32xf32>
    %cst_8 = arith.constant 1.000000e+00 : f32
    %cst_9 = arith.constant -1.000000e+00 : f32
    %12 = vector.broadcast %cst_8 : f32 to vector<8x32xf32>
    %13 = vector.broadcast %cst_9 : f32 to vector<8x32xf32>
    %14 = arith.select %11, %12, %13 : vector<8x32xi1>, vector<8x32xf32>
    %cst_10 = arith.constant 9.99999995E+11 : f32
    %15 = vector.broadcast %cst_10 : f32 to vector<8x32xf32>
    %16 = arith.mulf %3, %15 : vector<8x32xf32>
    %17 = arith.select %9, %14, %16 : vector<8x32xi1>, vector<8x32xf32>
    %c0_11 = arith.constant 0 : index
    %c0_12 = arith.constant 0 : index
    %18 = vector.load %arg1[%c0_11, %c0_12] : memref<112x32xf32, #tpu.memory_space<vmem>>, vector<32x32xf32>
    %cst_13 = arith.constant dense<0.000000e+00> : vector<8x32xf32>
    %19 = tpu.matmul %17, %18, %cst_13 {dimension_numbers = #tpu.dot_dimension_numbers<[1], [0], [0], [1], [0, 0, 1, 1], [], []>} : vector<8x32xf32>, vector<32x32xf32>, vector<8x32xf32> -> vector<8x32xf32>
    %c96 = arith.constant 96 : index
    %c0_14 = arith.constant 0 : index
    %20 = vector.load %arg1[%c96, %c0_14] : memref<112x32xf32, #tpu.memory_space<vmem>>, vector<1x32xf32>
    %21 = vector.broadcast %20 : vector<1x32xf32> to vector<8x32xf32>
    %22 = arith.addf %19, %21 : vector<8x32xf32>
    %c0_15 = arith.constant 0 : index
    %c0_16 = arith.constant 0 : index
    %23 = vector.load %arg2[%c0_15, %c0_16] : memref<104x64xf32, #tpu.memory_space<vmem>>, vector<32x64xf32>
    %cst_17 = arith.constant dense<0.000000e+00> : vector<8x64xf32>
    %24 = tpu.matmul %22, %23, %cst_17 {dimension_numbers = #tpu.dot_dimension_numbers<[1], [0], [0], [1], [0, 0, 1, 1], [], []>} : vector<8x32xf32>, vector<32x64xf32>, vector<8x64xf32> -> vector<8x64xf32>
    %c32_18 = arith.constant 32 : index
    %c0_19 = arith.constant 0 : index
    %25 = vector.load %arg2[%c32_18, %c0_19] : memref<104x64xf32, #tpu.memory_space<vmem>>, vector<32x64xf32>
    %cst_20 = arith.constant dense<0.000000e+00> : vector<8x64xf32>
    %26 = tpu.matmul %1, %25, %cst_20 {dimension_numbers = #tpu.dot_dimension_numbers<[1], [0], [0], [1], [0, 0, 1, 1], [], []>} : vector<8x32xf32>, vector<32x64xf32>, vector<8x64xf32> -> vector<8x64xf32>
    %27 = arith.addf %24, %26 : vector<8x64xf32>
    %c64_21 = arith.constant 64 : index
    %c0_22 = arith.constant 0 : index
    %28 = vector.load %arg2[%c64_21, %c0_22] : memref<104x64xf32, #tpu.memory_space<vmem>>, vector<32x64xf32>
    %cst_23 = arith.constant dense<0.000000e+00> : vector<8x64xf32>
    %29 = tpu.matmul %2, %28, %cst_23 {dimension_numbers = #tpu.dot_dimension_numbers<[1], [0], [0], [1], [0, 0, 1, 1], [], []>} : vector<8x32xf32>, vector<32x64xf32>, vector<8x64xf32> -> vector<8x64xf32>
    %30 = arith.addf %27, %29 : vector<8x64xf32>
    %c96_24 = arith.constant 96 : index
    %c0_25 = arith.constant 0 : index
    %31 = vector.load %arg2[%c96_24, %c0_25] : memref<104x64xf32, #tpu.memory_space<vmem>>, vector<1x64xf32>
    %32 = vector.broadcast %31 : vector<1x64xf32> to vector<8x64xf32>
    %33 = arith.addf %30, %32 : vector<8x64xf32>
    %34 = math.tanh %33 : vector<8x64xf32>
    %c32_26 = arith.constant 32 : index
    %c0_27 = arith.constant 0 : index
    %35 = vector.load %arg1[%c32_26, %c0_27] : memref<112x32xf32, #tpu.memory_space<vmem>>, vector<64x32xf32>
    %cst_28 = arith.constant dense<0.000000e+00> : vector<8x32xf32>
    %36 = tpu.matmul %34, %35, %cst_28 {dimension_numbers = #tpu.dot_dimension_numbers<[1], [0], [0], [1], [0, 0, 1, 1], [], []>} : vector<8x64xf32>, vector<64x32xf32>, vector<8x32xf32> -> vector<8x32xf32>
    %c104 = arith.constant 104 : index
    %c0_29 = arith.constant 0 : index
    %37 = vector.load %arg1[%c104, %c0_29] : memref<112x32xf32, #tpu.memory_space<vmem>>, vector<1x32xf32>
    %38 = vector.broadcast %37 : vector<1x32xf32> to vector<8x32xf32>
    %39 = arith.addf %36, %38 : vector<8x32xf32>
    %c0_30 = arith.constant 0 : index
    %c0_31 = arith.constant 0 : index
    %40 = vector.load %arg3[%c0_30, %c0_31] : memref<72x128xf32, #tpu.memory_space<vmem>>, vector<32x128xf32>
    %cst_32 = arith.constant dense<0.000000e+00> : vector<8x128xf32>
    %41 = tpu.matmul %39, %40, %cst_32 {dimension_numbers = #tpu.dot_dimension_numbers<[1], [0], [0], [1], [0, 0, 1, 1], [], []>} : vector<8x32xf32>, vector<32x128xf32>, vector<8x128xf32> -> vector<8x128xf32>
    %c64_33 = arith.constant 64 : index
    %c0_34 = arith.constant 0 : index
    %42 = vector.load %arg3[%c64_33, %c0_34] : memref<72x128xf32, #tpu.memory_space<vmem>>, vector<1x128xf32>
    %43 = vector.broadcast %42 : vector<1x128xf32> to vector<8x128xf32>
    %44 = arith.addf %41, %43 : vector<8x128xf32>
    %c0_35 = arith.constant 0 : index
    %c0_36 = arith.constant 0 : index
    %45 = vector.load %arg4[%c0_35, %c0_36] : memref<72x128xf32, #tpu.memory_space<vmem>>, vector<8x128xf32>
    tpu.vector_store %arg4[%c0_35, %c0_36], %44 {strides = array<i32>} : memref<72x128xf32, #tpu.memory_space<vmem>>, vector<8x128xf32>,
    return
  }
}

</mosaic_0001>

<llo_original>
// kernel: tenc_forward.1
$region0: #{tenc_forward.1}
  #allocation0 [shape = 'u32[]', space=smem, size = 0x4, offset = 0x4, fixed_abs, tag = 'smem constant byte address 0x4 - core index']
  #allocation1 [shape = 'u32[144,128]{1,0:T(1,128)}', space=vmem, size = 0x12000, scoped, tag = 'internal scratch']
  %s0 = inlined_call_operand.vmem [shape: f32[88,32], index: 0, kind: input, shape index: {}]
  %s1 = inlined_call_operand.vmem [shape: f32[112,32], index: 1, kind: input, shape index: {}]
  %s2 = inlined_call_operand.vmem [shape: f32[104,64], index: 2, kind: input, shape index: {}]
  %s3 = inlined_call_operand.vmem [shape: f32[72,128], index: 3, kind: input, shape index: {}]
  %s4 = inlined_call_operand.vmem [shape: f32[72,128], index: 4, kind: output, shape index: {}]
  %s5 = sld [smem:[#allocation0]]
  $region26: #{tenc_forward.1} parent=0
    _
  %s7 = ssub.s32 1, %s5
  %s8 = scalar_select 0, %s7, %s5
  // Predicated region
  $region2: #{tenc_forward.1} parent=0 // pred_check
    _
  $region3: #{tenc_forward.1} parent=0 // pred_check_branch
    %10 = sbr.rel (0) target = $region5
  $region4: #{tenc_forward.1} parent=0 // pred_region
    _
  $region5: #{tenc_forward.1} parent=0 // pred_fallthru
    _
  // Predicated region
  $region6: #{tenc_forward.1} parent=0 // pred_check
    _
  $region7: #{tenc_forward.1} parent=0 // pred_check_branch
    %12 = sbr.rel (0) target = $region9
  $region8: #{tenc_forward.1} parent=0 // pred_region
    _
  $region9: #{tenc_forward.1} parent=0 // pred_fallthru
    _
  // Predicated region
  $region10: #{tenc_forward.1} parent=0 // pred_check
    _
  $region11: #{tenc_forward.1} parent=0 // pred_check_branch
    %14 = sbr.rel (0) target = $region13
  $region12: #{tenc_forward.1} parent=0 // pred_region
    _
  $region13: #{tenc_forward.1} parent=0 // pred_fallthru
    _
  // Predicated region
  $region14: #{tenc_forward.1} parent=0 // pred_check
    _
  $region15: #{tenc_forward.1} parent=0 // pred_check_branch
    %16 = sbr.rel (0) target = $region17
  $region16: #{tenc_forward.1} parent=0 // pred_region
    _
  $region17: #{tenc_forward.1} parent=0 // pred_fallthru
    _
  %v17 = vld [vmem:[%s0] sm:$0xff]
  %v18 = vld [vmem:[%s0 + $0x8] sm:$0xff]
  %v19 = vld [vmem:[%s0 + $0x10] sm:$0xff]
  %v20 = vld [vmem:[%s0 + $0x18] sm:$0xff]
  %v21 = vld [vmem:[%s0 + $0x20] sm:$0xff]
  %v22 = vld [vmem:[%s0 + $0x28] sm:$0xff]
  %v23 = vld [vmem:[%s0 + $0x30] sm:$0xff]
  %v24 = vld [vmem:[%s0 + $0x38] sm:$0xff]
  %v25 = vld [vmem:[%s0 + $0x40] sm:$0xff]
  %v26 = vld [vmem:[%s0 + $0x48] sm:$0xff]
  %v27 = vld [vmem:[%s0 + $0x50] sm:$0xff]
  %v28 = vld [vmem:[%s3 + $0x20] sm:$0xff]
  %v29 = vld [vmem:[%s3 + $0x28] sm:$0xff]
  %v30 = vld [vmem:[%s3 + $0x30] sm:$0xff]
  %v31 = vld [vmem:[%s3 + $0x38] sm:$0xff]
  %vm32 = vcmask 261120
  %v34 = vsel %vm32, %v17, 0
  %v37 = vsel %vm32, %v18, 0
  %v40 = vsel %vm32, %v19, 0
  %v43 = vsel %vm32, %v20, 0
  %v46 = vsel %vm32, %v21, 0
  %v49 = vsel %vm32, %v22, 0
  %v52 = vsel %vm32, %v23, 0
  %v55 = vsel %vm32, %v24, 0
  %57 = vmatprep.subr.mxu0 0.0
  %58 = vmatpush1.msra.mxu0 %v28
  %59 = vmatprep.subr.mxu0 0.0
  %60 = vmatpush1.msra.mxu0 %v29
  %61 = vmatprep.subr.mxu0 0.0
  %62 = vmatpush1.msra.mxu0 %v30
  %63 = vmatprep.subr.mxu0 0.0
  %64 = vmatpush1.msra.mxu0 %v31
  %65 = vmatprep.subr.mxu0 0.0
  %66 = vmatpush1.msra.mxu0 0.0
  %67 = vmatprep.subr.mxu0 0.0
  %68 = vmatpush1.msra.mxu0 0.0
  %69 = vmatprep.subr.mxu0 0.0
  %70 = vmatpush1.msra.mxu0 0.0
  %71 = vmatprep.subr.mxu0 0.0
  %72 = vmatpush1.msra.mxu0 0.0
  %73 = vmatprep.subr.mxu0 0.0
  %74 = vmatpush1.msra.mxu0 0.0
  %75 = vmatprep.subr.mxu0 0.0
  %76 = vmatpush1.msra.mxu0 0.0
  %77 = vmatprep.subr.mxu0 0.0
  %78 = vmatpush1.msra.mxu0 0.0
  %79 = vmatprep.subr.mxu0 0.0
  %80 = vmatpush1.msra.mxu0 0.0
  %81 = vmatprep.subr.mxu0 0.0
  %82 = vmatpush1.msra.mxu0 0.0
  %83 = vmatprep.subr.mxu0 0.0
  %84 = vmatpush1.msra.mxu0 0.0
  %85 = vmatprep.subr.mxu0 0.0
  %86 = vmatpush1.msra.mxu0 0.0
  %87 = vmatprep.subr.mxu0 0.0
  %88 = vmatpush1.msra.mxu0 0.0
  %89 = vmatprep.subr.mxu0 0.0
  %90 = vmatpush1.msra.mxu0 0.0
  %91 = vmatprep.subr.mxu0 0.0
  %92 = vmatpush1.msra.mxu0 0.0
  %93 = vmatprep.subr.mxu0 0.0
  %94 = vmatpush1.msra.mxu0 0.0
  %95 = vmatprep.subr.mxu0 0.0
  %96 = vmatpush1.msra.mxu0 0.0
  %97 = vmatprep.subr.mxu0 0.0
  %98 = vmatpush1.msra.mxu0 0.0
  %99 = vmatprep.subr.mxu0 0.0
  %100 = vmatpush1.msra.mxu0 0.0
  %101 = vmatprep.subr.mxu0 0.0
  %102 = vmatpush1.msra.mxu0 0.0
  %103 = vmatprep.subr.mxu0 0.0
  %104 = vmatpush1.msra.mxu0 0.0
  %105 = vmatprep.subr.mxu0 0.0
  %106 = vmatpush1.msra.mxu0 0.0
  %107 = vmatprep.subr.mxu0 0.0
  %108 = vmatpush1.msra.mxu0 0.0
  %109 = vmatprep.subr.mxu0 0.0
  %110 = vmatpush1.msra.mxu0 0.0
  %111 = vmatprep.subr.mxu0 0.0
  %112 = vmatpush1.msra.mxu0 0.0
  %113 = vmatprep.subr.mxu0 0.0
  %114 = vmatpush1.msra.mxu0 0.0
  %115 = vmatprep.subr.mxu0 0.0
  %116 = vmatpush1.msra.mxu0 0.0
  %117 = vmatprep.subr.mxu0 0.0
  %118 = vmatpush1.msra.mxu0 0.0
  %119 = vmatprep.subr.mxu0 0.0
  %120 = vmatpush1.msra.mxu0 0.0
  %121 = vmatprep.mubr.f32.mxu0 0.0
  %122 = vmatmul.mubr.f32.gmra.mrb[0].mxu0 %v34
  %v123 = vpop.f32.mrb[0].mxu0
  %v124 = vadd.f32 0.0, %v123
  %v125 = vpop.f32.mrb[0].mxu0
  %126 = vmatprep.mubr.f32.mxu0 0.0
  %127 = vmatmul.mubr.f32.gmra.mrb[0].mxu0 %v37
  %v128 = vpop.f32.mrb[0].mxu0
  %v129 = vadd.f32 0.0, %v128
  %v130 = vpop.f32.mrb[0].mxu0
  %131 = vmatprep.mubr.f32.mxu0 0.0
  %132 = vmatmul.mubr.f32.gmra.mrb[0].mxu0 %v40
  %v133 = vpop.f32.mrb[0].mxu0
  %v134 = vadd.f32 0.0, %v133
  %v135 = vpop.f32.mrb[0].mxu0
  %136 = vmatprep.mubr.f32.mxu0 0.0
  %137 = vmatmul.mubr.f32.gmra.mrb[0].mxu0 %v43
  %v138 = vpop.f32.mrb[0].mxu0
  %v139 = vadd.f32 0.0, %v138
  %v140 = vpop.f32.mrb[0].mxu0
  %141 = vmatprep.mubr.f32.mxu0 0.0
  %142 = vmatmul.mubr.f32.gmra.mrb[0].mxu0 %v46
  %v143 = vpop.f32.mrb[0].mxu0
  %v144 = vadd.f32 0.0, %v143
  %v145 = vpop.f32.mrb[0].mxu0
  %146 = vmatprep.mubr.f32.mxu0 0.0
  %147 = vmatmul.mubr.f32.gmra.mrb[0].mxu0 %v49
  %v148 = vpop.f32.mrb[0].mxu0
  %v149 = vadd.f32 0.0, %v148
  %v150 = vpop.f32.mrb[0].mxu0
  %151 = vmatprep.mubr.f32.mxu0 0.0
  %152 = vmatmul.mubr.f32.gmra.mrb[0].mxu0 %v52
  %v153 = vpop.f32.mrb[0].mxu0
  %v154 = vadd.f32 0.0, %v153
  %v155 = vpop.f32.mrb[0].mxu0
  %156 = vmatprep.mubr.f32.mxu0 0.0
  %157 = vmatmul.mubr.f32.gmra.mrb[0].mxu0 %v55
  %v158 = vpop.f32.mrb[0].mxu0
  %v159 = vadd.f32 0.0, %v158
  %v160 = vpop.f32.mrb[0].mxu0
  %161 = vdwg.mxu0
  %162 = vst [vmem:[%s4 + $0x8] sm:$0xff] %v124
  %163 = vst [vmem:[%s4 + $0x10] sm:$0xff] %v129
  %164 = vst [vmem:[%s4 + $0x18] sm:$0xff] %v134
  %165 = vst [vmem:[%s4 + $0x20] sm:$0xff] %v139
  %166 = vst [vmem:[%s4 + $0x28] sm:$0xff] %v144
  %167 = vst [vmem:[%s4 + $0x30] sm:$0xff] %v149
  %168 = vst [vmem:[%s4 + $0x38] sm:$0xff] %v154
  %169 = vst [vmem:[%s4 + $0x40] sm:$0xff] %v159
  %v170 = vand.u32 2147483647, %v27
  %vm171 = vcmp.ge.f32.partialorder %v170, 1e-12
  %vm172 = vcmp.ge.f32.partialorder %v27, 0.0
  %v173 = vsel %vm172, 1.0, -1.0
  %v174 = vmul.f32 %v27, 1e+12
  %v175 = vsel %vm171, %v173, %v174
  %v176 = vld [vmem:[%s1] sm:$0xff]
  %v177 = vld [vmem:[%s1 + $0x8] sm:$0xff]
  %v178 = vld [vmem:[%s1 + $0x10] sm:$0xff]
  %v179 = vld [vmem:[%s1 + $0x18] sm:$0xff]
  %v180 = vld [vmem:[%s1 + $0x60] sm:$0x1]
  %v181 = vlaneseq
  %v182 = vshrl.u32 %v181, 7
  %v183 = vsub.s32 0, %v182
  %v184 = vrot.slane %v180, %v183
  %v186 = vsel %vm32, %v175, 0
  %188 = vmatprep.subr.mxu0 0.0
  %189 = vmatpush1.msra.mxu0 %v176
  %190 = vmatprep.subr.mxu0 0.0
  %191 = vmatpush1.msra.mxu0 %v177
  %192 = vmatprep.subr.mxu0 0.0
  %193 = vmatpush1.msra.mxu0 %v178
  %194 = vmatprep.subr.mxu0 0.0
  %195 = vmatpush1.msra.mxu0 %v179
  %196 = vmatprep.subr.mxu0 0.0
  %197 = vmatpush1.msra.mxu0 0.0
  %198 = vmatprep.subr.mxu0 0.0
  %199 = vmatpush1.msra.mxu0 0.0
  %200 = vmatprep.subr.mxu0 0.0
  %201 = vmatpush1.msra.mxu0 0.0
  %202 = vmatprep.subr.mxu0 0.0
  %203 = vmatpush1.msra.mxu0 0.0
  %204 = vmatprep.subr.mxu0 0.0
  %205 = vmatpush1.msra.mxu0 0.0
  %206 = vmatprep.subr.mxu0 0.0
  %207 = vmatpush1.msra.mxu0 0.0
  %208 = vmatprep.subr.mxu0 0.0
  %209 = vmatpush1.msra.mxu0 0.0
  %210 = vmatprep.subr.mxu0 0.0
  %211 = vmatpush1.msra.mxu0 0.0
  %212 = vmatprep.subr.mxu0 0.0
  %213 = vmatpush1.msra.mxu0 0.0
  %214 = vmatprep.subr.mxu0 0.0
  %215 = vmatpush1.msra.mxu0 0.0
  %216 = vmatprep.subr.mxu0 0.0
  %217 = vmatpush1.msra.mxu0 0.0
  %218 = vmatprep.subr.mxu0 0.0
  %219 = vmatpush1.msra.mxu0 0.0
  %220 = vmatprep.subr.mxu0 0.0
  %221 = vmatpush1.msra.mxu0 0.0
  %222 = vmatprep.subr.mxu0 0.0
  %223 = vmatpush1.msra.mxu0 0.0
  %224 = vmatprep.subr.mxu0 0.0
  %225 = vmatpush1.msra.mxu0 0.0
  %226 = vmatprep.subr.mxu0 0.0
  %227 = vmatpush1.msra.mxu0 0.0
  %228 = vmatprep.subr.mxu0 0.0
  %229 = vmatpush1.msra.mxu0 0.0
  %230 = vmatprep.subr.mxu0 0.0
  %231 = vmatpush1.msra.mxu0 0.0
  %232 = vmatprep.subr.mxu0 0.0
  %233 = vmatpush1.msra.mxu0 0.0
  %234 = vmatprep.subr.mxu0 0.0
  %235 = vmatpush1.msra.mxu0 0.0
  %236 = vmatprep.subr.mxu0 0.0
  %237 = vmatpush1.msra.mxu0 0.0
  %238 = vmatprep.subr.mxu0 0.0
  %239 = vmatpush1.msra.mxu0 0.0
  %240 = vmatprep.subr.mxu0 0.0
  %241 = vmatpush1.msra.mxu0 0.0
  %242 = vmatprep.subr.mxu0 0.0
  %243 = vmatpush1.msra.mxu0 0.0
  %244 = vmatprep.subr.mxu0 0.0
  %245 = vmatpush1.msra.mxu0 0.0
  %246 = vmatprep.subr.mxu0 0.0
  %247 = vmatpush1.msra.mxu0 0.0
  %248 = vmatprep.subr.mxu0 0.0
  %249 = vmatpush1.msra.mxu0 0.0
  %250 = vmatprep.subr.mxu0 0.0
  %251 = vmatpush1.msra.mxu0 0.0
  %252 = vmatprep.mubr.f32.mxu0 0.0
  %253 = vmatmul.mubr.f32.gmra.mrb[0].mxu0 %v186
  %v254 = vpop.f32.mrb[0].mxu0
  %v255 = vadd.f32 %v184, %v254
  %v256 = vpop.f32.mrb[0].mxu0
  %257 = vdwg.mxu0
  %v258 = vld [vmem:[%s2] sm:$0xff]
  %v259 = vld [vmem:[%s2 + $0x8] sm:$0xff]
  %v260 = vld [vmem:[%s2 + $0x10] sm:$0xff]
  %v261 = vld [vmem:[%s2 + $0x18] sm:$0xff]
  %v262 = vld [vmem:[%s2 + $0x20] sm:$0xff]
  %v263 = vld [vmem:[%s2 + $0x28] sm:$0xff]
  %v264 = vld [vmem:[%s2 + $0x30] sm:$0xff]
  %v265 = vld [vmem:[%s2 + $0x38] sm:$0xff]
  %v267 = vsel %vm32, %v25, 0
  %269 = vmatprep.subr.mxu0 0.0
  %270 = vmatpush1.msra.mxu0 %v262
  %271 = vmatprep.subr.mxu0 0.0
  %272 = vmatpush1.msra.mxu0 %v263
  %273 = vmatprep.subr.mxu0 0.0
  %274 = vmatpush1.msra.mxu0 %v264
  %275 = vmatprep.subr.mxu0 0.0
  %276 = vmatpush1.msra.mxu0 %v265
  %277 = vmatprep.subr.mxu0 0.0
  %278 = vmatpush1.msra.mxu0 0.0
  %279 = vmatprep.subr.mxu0 0.0
  %280 = vmatpush1.msra.mxu0 0.0
  %281 = vmatprep.subr.mxu0 0.0
  %282 = vmatpush1.msra.mxu0 0.0
  %283 = vmatprep.subr.mxu0 0.0
  %284 = vmatpush1.msra.mxu0 0.0
  %285 = vmatprep.subr.mxu0 0.0
  %286 = vmatpush1.msra.mxu0 0.0
  %287 = vmatprep.subr.mxu0 0.0
  %288 = vmatpush1.msra.mxu0 0.0
  %289 = vmatprep.subr.mxu0 0.0
  %290 = vmatpush1.msra.mxu0 0.0
  %291 = vmatprep.subr.mxu0 0.0
  %292 = vmatpush1.msra.mxu0 0.0
  %293 = vmatprep.subr.mxu0 0.0
  %294 = vmatpush1.msra.mxu0 0.0
  %295 = vmatprep.subr.mxu0 0.0
  %296 = vmatpush1.msra.mxu0 0.0
  %297 = vmatprep.subr.mxu0 0.0
  %298 = vmatpush1.msra.mxu0 0.0
  %299 = vmatprep.subr.mxu0 0.0
  %300 = vmatpush1.msra.mxu0 0.0
  %301 = vmatprep.subr.mxu0 0.0
  %302 = vmatpush1.msra.mxu0 0.0
  %303 = vmatprep.subr.mxu0 0.0
  %304 = vmatpush1.msra.mxu0 0.0
  %305 = vmatprep.subr.mxu0 0.0
  %306 = vmatpush1.msra.mxu0 0.0
  %307 = vmatprep.subr.mxu0 0.0
  %308 = vmatpush1.msra.mxu0 0.0
  %309 = vmatprep.subr.mxu0 0.0
  %310 = vmatpush1.msra.mxu0 0.0
  %311 = vmatprep.subr.mxu0 0.0
  %312 = vmatpush1.msra.mxu0 0.0
  %313 = vmatprep.subr.mxu0 0.0
  %314 = vmatpush1.msra.mxu0 0.0
  %315 = vmatprep.subr.mxu0 0.0
  %316 = vmatpush1.msra.mxu0 0.0
  %317 = vmatprep.subr.mxu0 0.0
  %318 = vmatpush1.msra.mxu0 0.0
  %319 = vmatprep.subr.mxu0 0.0
  %320 = vmatpush1.msra.mxu0 0.0
  %321 = vmatprep.subr.mxu0 0.0
  %322 = vmatpush1.msra.mxu0 0.0
  %323 = vmatprep.subr.mxu0 0.0
  %324 = vmatpush1.msra.mxu0 0.0
  %325 = vmatprep.subr.mxu0 0.0
  %326 = vmatpush1.msra.mxu0 0.0
  %327 = vmatprep.subr.mxu0 0.0
  %328 = vmatpush1.msra.mxu0 0.0
  %329 = vmatprep.subr.mxu0 0.0
  %330 = vmatpush1.msra.mxu0 0.0
  %331 = vmatprep.subr.mxu0 0.0
  %332 = vmatpush1.msra.mxu0 0.0
  %333 = vmatprep.mubr.f32.mxu0 0.0
  %334 = vmatmul.mubr.f32.gmra.mrb[0].mxu0 %v267
  %v335 = vpop.f32.mrb[0].mxu0
  %v336 = vadd.f32 0.0, %v335
  %v337 = vpop.f32.mrb[0].mxu0
  %338 = vdwg.mxu0
  %v340 = vsel %vm32, %v255, 0
  %342 = vmatprep.subr.mxu0 0.0
  %343 = vmatpush1.msra.mxu0 %v258
  %344 = vmatprep.subr.mxu0 0.0
  %345 = vmatpush1.msra.mxu0 %v259
  %346 = vmatprep.subr.mxu0 0.0
  %347 = vmatpush1.msra.mxu0 %v260
  %348 = vmatprep.subr.mxu0 0.0
  %349 = vmatpush1.msra.mxu0 %v261
  %350 = vmatprep.subr.mxu0 0.0
  %351 = vmatpush1.msra.mxu0 0.0
  %352 = vmatprep.subr.mxu0 0.0
  %353 = vmatpush1.msra.mxu0 0.0
  %354 = vmatprep.subr.mxu0 0.0
  %355 = vmatpush1.msra.mxu0 0.0
  %356 = vmatprep.subr.mxu0 0.0
  %357 = vmatpush1.msra.mxu0 0.0
  %358 = vmatprep.subr.mxu0 0.0
  %359 = vmatpush1.msra.mxu0 0.0
  %360 = vmatprep.subr.mxu0 0.0
  %361 = vmatpush1.msra.mxu0 0.0
  %362 = vmatprep.subr.mxu0 0.0
  %363 = vmatpush1.msra.mxu0 0.0
  %364 = vmatprep.subr.mxu0 0.0
  %365 = vmatpush1.msra.mxu0 0.0
  %366 = vmatprep.subr.mxu0 0.0
  %367 = vmatpush1.msra.mxu0 0.0
  %368 = vmatprep.subr.mxu0 0.0
  %369 = vmatpush1.msra.mxu0 0.0
  %370 = vmatprep.subr.mxu0 0.0
  %371 = vmatpush1.msra.mxu0 0.0
  %372 = vmatprep.subr.mxu0 0.0
  %373 = vmatpush1.msra.mxu0 0.0
  %374 = vmatprep.subr.mxu0 0.0
  %375 = vmatpush1.msra.mxu0 0.0
  %376 = vmatprep.subr.mxu0 0.0
  %377 = vmatpush1.msra.mxu0 0.0
  %378 = vmatprep.subr.mxu0 0.0
  %379 = vmatpush1.msra.mxu0 0.0
  %380 = vmatprep.subr.mxu0 0.0
  %381 = vmatpush1.msra.mxu0 0.0
  %382 = vmatprep.subr.mxu0 0.0
  %383 = vmatpush1.msra.mxu0 0.0
  %384 = vmatprep.subr.mxu0 0.0
  %385 = vmatpush1.msra.mxu0 0.0
  %386 = vmatprep.subr.mxu0 0.0
  %387 = vmatpush1.msra.mxu0 0.0
  %388 = vmatprep.subr.mxu0 0.0
  %389 = vmatpush1.msra.mxu0 0.0
  %390 = vmatprep.subr.mxu0 0.0
  %391 = vmatpush1.msra.mxu0 0.0
  %392 = vmatprep.subr.mxu0 0.0
  %393 = vmatpush1.msra.mxu0 0.0
  %394 = vmatprep.subr.mxu0 0.0
  %395 = vmatpush1.msra.mxu0 0.0
  %396 = vmatprep.subr.mxu0 0.0
  %397 = vmatpush1.msra.mxu0 0.0
  %398 = vmatprep.subr.mxu0 0.0
  %399 = vmatpush1.msra.mxu0 0.0
  %400 = vmatprep.subr.mxu0 0.0
  %401 = vmatpush1.msra.mxu0 0.0
  %402 = vmatprep.subr.mxu0 0.0
  %403 = vmatpush1.msra.mxu0 0.0
  %404 = vmatprep.subr.mxu0 0.0
  %405 = vmatpush1.msra.mxu0 0.0
  %406 = vmatprep.mubr.f32.mxu0 0.0
  %407 = vmatmul.mubr.f32.gmra.mrb[0].mxu0 %v340
  %v408 = vpop.f32.mrb[0].mxu0
  %v409 = vadd.f32 %v336, %v408
  %v410 = vpop.f32.mrb[0].mxu0
  %411 = vdwg.mxu0
  %v412 = vld [vmem:[%s2 + $0x40] sm:$0xff]
  %v413 = vld [vmem:[%s2 + $0x48] sm:$0xff]
  %v414 = vld [vmem:[%s2 + $0x50] sm:$0xff]
  %v415 = vld [vmem:[%s2 + $0x58] sm:$0xff]
  %v417 = vsel %vm32, %v26, 0
  %419 = vmatprep.subr.mxu0 0.0
  %420 = vmatpush1.msra.mxu0 %v412
  %421 = vmatprep.subr.mxu0 0.0
  %422 = vmatpush1.msra.mxu0 %v413
  %423 = vmatprep.subr.mxu0 0.0
  %424 = vmatpush1.msra.mxu0 %v414
  %425 = vmatprep.subr.mxu0 0.0
  %426 = vmatpush1.msra.mxu0 %v415
  %427 = vmatprep.subr.mxu0 0.0
  %428 = vmatpush1.msra.mxu0 0.0
  %429 = vmatprep.subr.mxu0 0.0
  %430 = vmatpush1.msra.mxu0 0.0
  %431 = vmatprep.subr.mxu0 0.0
  %432 = vmatpush1.msra.mxu0 0.0
  %433 = vmatprep.subr.mxu0 0.0
  %434 = vmatpush1.msra.mxu0 0.0
  %435 = vmatprep.subr.mxu0 0.0
  %436 = vmatpush1.msra.mxu0 0.0
  %437 = vmatprep.subr.mxu0 0.0
  %438 = vmatpush1.msra.mxu0 0.0
  %439 = vmatprep.subr.mxu0 0.0
  %440 = vmatpush1.msra.mxu0 0.0
  %441 = vmatprep.subr.mxu0 0.0
  %442 = vmatpush1.msra.mxu0 0.0
  %443 = vmatprep.subr.mxu0 0.0
  %444 = vmatpush1.msra.mxu0 0.0
  %445 = vmatprep.subr.mxu0 0.0
  %446 = vmatpush1.msra.mxu0 0.0
  %447 = vmatprep.subr.mxu0 0.0
  %448 = vmatpush1.msra.mxu0 0.0
  %449 = vmatprep.subr.mxu0 0.0
  %450 = vmatpush1.msra.mxu0 0.0
  %451 = vmatprep.subr.mxu0 0.0
  %452 = vmatpush1.msra.mxu0 0.0
  %453 = vmatprep.subr.mxu0 0.0
  %454 = vmatpush1.msra.mxu0 0.0
  %455 = vmatprep.subr.mxu0 0.0
  %456 = vmatpush1.msra.mxu0 0.0
  %457 = vmatprep.subr.mxu0 0.0
  %458 = vmatpush1.msra.mxu0 0.0
  %459 = vmatprep.subr.mxu0 0.0
  %460 = vmatpush1.msra.mxu0 0.0
  %461 = vmatprep.subr.mxu0 0.0
  %462 = vmatpush1.msra.mxu0 0.0
  %463 = vmatprep.subr.mxu0 0.0
  %464 = vmatpush1.msra.mxu0 0.0
  %465 = vmatprep.subr.mxu0 0.0
  %466 = vmatpush1.msra.mxu0 0.0
  %467 = vmatprep.subr.mxu0 0.0
  %468 = vmatpush1.msra.mxu0 0.0
  %469 = vmatprep.subr.mxu0 0.0
  %470 = vmatpush1.msra.mxu0 0.0
  %471 = vmatprep.subr.mxu0 0.0
  %472 = vmatpush1.msra.mxu0 0.0
  %473 = vmatprep.subr.mxu0 0.0
  %474 = vmatpush1.msra.mxu0 0.0
  %475 = vmatprep.subr.mxu0 0.0
  %476 = vmatpush1.msra.mxu0 0.0
  %477 = vmatprep.subr.mxu0 0.0
  %478 = vmatpush1.msra.mxu0 0.0
  %479 = vmatprep.subr.mxu0 0.0
  %480 = vmatpush1.msra.mxu0 0.0
  %481 = vmatprep.subr.mxu0 0.0
  %482 = vmatpush1.msra.mxu0 0.0
  %483 = vmatprep.mubr.f32.mxu0 0.0
  %484 = vmatmul.mubr.f32.gmra.mrb[0].mxu0 %v417
  %v485 = vpop.f32.mrb[0].mxu0
  %v486 = vadd.f32 0.0, %v485
  %v487 = vpop.f32.mrb[0].mxu0
  %488 = vdwg.mxu0
  %v489 = vadd.f32 %v409, %v486
  %v490 = vld [vmem:[%s2 + $0x60] sm:$0x1]
  %v491 = vlaneseq
  %v492 = vshrl.u32 %v491, 7
  %v493 = vsub.s32 0, %v492
  %v494 = vrot.slane %v490, %v493
  %v495 = vadd.f32 %v489, %v494
  %v496 = vtanh.pop %v495
  %v497 = vld [vmem:[%s1 + $0x20] sm:$0xff]
  %v498 = vld [vmem:[%s1 + $0x28] sm:$0xff]
  %v499 = vld [vmem:[%s1 + $0x30] sm:$0xff]
  %v500 = vld [vmem:[%s1 + $0x38] sm:$0xff]
  %v501 = vld [vmem:[%s1 + $0x40] sm:$0xff]
  %v502 = vld [vmem:[%s1 + $0x48] sm:$0xff]
  %v503 = vld [vmem:[%s1 + $0x50] sm:$0xff]
  %v504 = vld [vmem:[%s1 + $0x58] sm:$0xff]
  %v505 = vld [vmem:[%s1 + $0x68] sm:$0x1]
  %v506 = vlaneseq
  %v507 = vshrl.u32 %v506, 7
  %v508 = vsub.s32 0, %v507
  %v509 = vrot.slane %v505, %v508
  %vm510 = vcmask 523264
  %v512 = vsel %vm510, %v496, 0
  %514 = vmatprep.subr.mxu0 0.0
  %515 = vmatpush1.msra.mxu0 %v497
  %516 = vmatprep.subr.mxu0 0.0
  %517 = vmatpush1.msra.mxu0 %v498
  %518 = vmatprep.subr.mxu0 0.0
  %519 = vmatpush1.msra.mxu0 %v499
  %520 = vmatprep.subr.mxu0 0.0
  %521 = vmatpush1.msra.mxu0 %v500
  %522 = vmatprep.subr.mxu0 0.0
  %523 = vmatpush1.msra.mxu0 %v501
  %524 = vmatprep.subr.mxu0 0.0
  %525 = vmatpush1.msra.mxu0 %v502
  %526 = vmatprep.subr.mxu0 0.0
  %527 = vmatpush1.msra.mxu0 %v503
  %528 = vmatprep.subr.mxu0 0.0
  %529 = vmatpush1.msra.mxu0 %v504
  %530 = vmatprep.subr.mxu0 0.0
  %531 = vmatpush1.msra.mxu0 0.0
  %532 = vmatprep.subr.mxu0 0.0
  %533 = vmatpush1.msra.mxu0 0.0
  %534 = vmatprep.subr.mxu0 0.0
  %535 = vmatpush1.msra.mxu0 0.0
  %536 = vmatprep.subr.mxu0 0.0
  %537 = vmatpush1.msra.mxu0 0.0
  %538 = vmatprep.subr.mxu0 0.0
  %539 = vmatpush1.msra.mxu0 0.0
  %540 = vmatprep.subr.mxu0 0.0
  %541 = vmatpush1.msra.mxu0 0.0
  %542 = vmatprep.subr.mxu0 0.0
  %543 = vmatpush1.msra.mxu0 0.0
  %544 = vmatprep.subr.mxu0 0.0
  %545 = vmatpush1.msra.mxu0 0.0
  %546 = vmatprep.subr.mxu0 0.0
  %547 = vmatpush1.msra.mxu0 0.0
  %548 = vmatprep.subr.mxu0 0.0
  %549 = vmatpush1.msra.mxu0 0.0
  %550 = vmatprep.subr.mxu0 0.0
  %551 = vmatpush1.msra.mxu0 0.0
  %552 = vmatprep.subr.mxu0 0.0
  %553 = vmatpush1.msra.mxu0 0.0
  %554 = vmatprep.subr.mxu0 0.0
  %555 = vmatpush1.msra.mxu0 0.0
  %556 = vmatprep.subr.mxu0 0.0
  %557 = vmatpush1.msra.mxu0 0.0
  %558 = vmatprep.subr.mxu0 0.0
  %559 = vmatpush1.msra.mxu0 0.0
  %560 = vmatprep.subr.mxu0 0.0
  %561 = vmatpush1.msra.mxu0 0.0
  %562 = vmatprep.subr.mxu0 0.0
  %563 = vmatpush1.msra.mxu0 0.0
  %564 = vmatprep.subr.mxu0 0.0
  %565 = vmatpush1.msra.mxu0 0.0
  %566 = vmatprep.subr.mxu0 0.0
  %567 = vmatpush1.msra.mxu0 0.0
  %568 = vmatprep.subr.mxu0 0.0
  %569 = vmatpush1.msra.mxu0 0.0
  %570 = vmatprep.subr.mxu0 0.0
  %571 = vmatpush1.msra.mxu0 0.0
  %572 = vmatprep.subr.mxu0 0.0
  %573 = vmatpush1.msra.mxu0 0.0
  %574 = vmatprep.subr.mxu0 0.0
  %575 = vmatpush1.msra.mxu0 0.0
  %576 = vmatprep.subr.mxu0 0.0
  %577 = vmatpush1.msra.mxu0 0.0
  %578 = vmatprep.mubr.f32.mxu0 0.0
  %579 = vmatmul.mubr.f32.gmra.mrb[0].mxu0 %v512
  %v580 = vpop.f32.mrb[0].mxu0
  %v581 = vadd.f32 %v509, %v580
  %v582 = vpop.f32.mrb[0].mxu0
  %583 = vdwg.mxu0
  %v584 = vld [vmem:[%s3] sm:$0xff]
  %v585 = vld [vmem:[%s3 + $0x8] sm:$0xff]
  %v586 = vld [vmem:[%s3 + $0x10] sm:$0xff]
  %v587 = vld [vmem:[%s3 + $0x18] sm:$0xff]
  %v588 = vld [vmem:[%s3 + $0x40] sm:$0x1]
  %v589 = vlaneseq
  %v590 = vshrl.u32 %v589, 7
  %v591 = vsub.s32 0, %v590
  %v592 = vrot.slane %v588, %v591
  %v594 = vsel %vm32, %v581, 0
  %596 = vmatprep.subr.mxu0 0.0
  %597 = vmatpush1.msra.mxu0 %v584
  %598 = vmatprep.subr.mxu0 0.0
  %599 = vmatpush1.msra.mxu0 %v585
  %600 = vmatprep.subr.mxu0 0.0
  %601 = vmatpush1.msra.mxu0 %v586
  %602 = vmatprep.subr.mxu0 0.0
  %603 = vmatpush1.msra.mxu0 %v587
  %604 = vmatprep.subr.mxu0 0.0
  %605 = vmatpush1.msra.mxu0 0.0
  %606 = vmatprep.subr.mxu0 0.0
  %607 = vmatpush1.msra.mxu0 0.0
  %608 = vmatprep.subr.mxu0 0.0
  %609 = vmatpush1.msra.mxu0 0.0
  %610 = vmatprep.subr.mxu0 0.0
  %611 = vmatpush1.msra.mxu0 0.0
  %612 = vmatprep.subr.mxu0 0.0
  %613 = vmatpush1.msra.mxu0 0.0
  %614 = vmatprep.subr.mxu0 0.0
  %615 = vmatpush1.msra.mxu0 0.0
  %616 = vmatprep.subr.mxu0 0.0
  %617 = vmatpush1.msra.mxu0 0.0
  %618 = vmatprep.subr.mxu0 0.0
  %619 = vmatpush1.msra.mxu0 0.0
  %620 = vmatprep.subr.mxu0 0.0
  %621 = vmatpush1.msra.mxu0 0.0
  %622 = vmatprep.subr.mxu0 0.0
  %623 = vmatpush1.msra.mxu0 0.0
  %624 = vmatprep.subr.mxu0 0.0
  %625 = vmatpush1.msra.mxu0 0.0
  %626 = vmatprep.subr.mxu0 0.0
  %627 = vmatpush1.msra.mxu0 0.0
  %628 = vmatprep.subr.mxu0 0.0
  %629 = vmatpush1.msra.mxu0 0.0
  %630 = vmatprep.subr.mxu0 0.0
  %631 = vmatpush1.msra.mxu0 0.0
  %632 = vmatprep.subr.mxu0 0.0
  %633 = vmatpush1.msra.mxu0 0.0
  %634 = vmatprep.subr.mxu0 0.0
  %635 = vmatpush1.msra.mxu0 0.0
  %636 = vmatprep.subr.mxu0 0.0
  %637 = vmatpush1.msra.mxu0 0.0
  %638 = vmatprep.subr.mxu0 0.0
  %639 = vmatpush1.msra.mxu0 0.0
  %640 = vmatprep.subr.mxu0 0.0
  %641 = vmatpush1.msra.mxu0 0.0
  %642 = vmatprep.subr.mxu0 0.0
  %643 = vmatpush1.msra.mxu0 0.0
  %644 = vmatprep.subr.mxu0 0.0
  %645 = vmatpush1.msra.mxu0 0.0
  %646 = vmatprep.subr.mxu0 0.0
  %647 = vmatpush1.msra.mxu0 0.0
  %648 = vmatprep.subr.mxu0 0.0
  %649 = vmatpush1.msra.mxu0 0.0
  %650 = vmatprep.subr.mxu0 0.0
  %651 = vmatpush1.msra.mxu0 0.0
  %652 = vmatprep.subr.mxu0 0.0
  %653 = vmatpush1.msra.mxu0 0.0
  %654 = vmatprep.subr.mxu0 0.0
  %655 = vmatpush1.msra.mxu0 0.0
  %656 = vmatprep.subr.mxu0 0.0
  %657 = vmatpush1.msra.mxu0 0.0
  %658 = vmatprep.subr.mxu0 0.0
  %659 = vmatpush1.msra.mxu0 0.0
  %660 = vmatprep.mubr.f32.mxu0 0.0
  %661 = vmatmul.mubr.f32.gmra.mrb[0].mxu0 %v594
  %v662 = vpop.f32.mrb[0].mxu0
  %v663 = vadd.f32 %v592, %v662
  %v664 = vpop.f32.mrb[0].mxu0
  %665 = vdwg.mxu0
  %666 = vst [vmem:[%s4] sm:$0xff] %v663
  // Predicated region
  $region18: #{tenc_forward.1} parent=0 // pred_check
    _
  $region19: #{tenc_forward.1} parent=0 // pred_check_branch
    %668 = sbr.rel (0) target = $region21
  $region20: #{tenc_forward.1} parent=0 // pred_region
    _
  $region21: #{tenc_forward.1} parent=0 // pred_fallthru
    _
  // Predicated region
  $region22: #{tenc_forward.1} parent=0 // pred_check
    _
  $region23: #{tenc_forward.1} parent=0 // pred_check_branch
    %670 = sbr.rel (0) target = $region25
  $region24: #{tenc_forward.1} parent=0 // pred_region
    _
  $region25: #{tenc_forward.1} parent=0 // pred_fallthru
    _

</llo_original>
